<compile_context>
chip_gen: v5e
topology: v5e:2x2
jax: 0.10.0
libtpu: 0.0.40
codegen_flags: <defaults>
</compile_context>

<pallas_src>
import jax
import jax.numpy as jnp
from jax.experimental import pallas as pl
from jax.experimental.pallas import tpu as pltpu

NUM_CLASSES = 10


def _round_up(x, m):
    return ((x + m - 1) // m) * m


def _tensorcores_per_device() -> int:
    """Best-effort TensorCore count of one addressable device (1 on v5e/v6e)."""
    try:
        kind = jax.devices()[0].device_kind.lower()
    except Exception:
        return 1
    if "lite" in kind or "v5e" in kind or "v6e" in kind:
        return 1                      # single TensorCore per chip
    if "v4" in kind or "v5p" in kind or "v7" in kind:
        return 2                      # megacore (v4/v5p) or dual-TC (v7x)
    return 1


def _default_tile_b() -> int:
    """Lanes per grid step, sized against the per-generation scoped-VMEM default."""
    try:
        kind = jax.devices()[0].device_kind.lower()
    except Exception:
        return 32768
    if "v5" in kind:                  # v5e: 16 MiB scoped-VMEM default
        return 32768
    return 65536                      # v6e / v7x: 32 MiB scoped-VMEM default


def _hinge_loss_kernel(scores_ref, labels_ref, partial_ref, cls_sc):
    """One (C, TB) tile of the transposed scores; accumulates margin sums."""
    i = pl.program_id(1)              # tile index within this split (reduction axis)

    @pl.when(i == 0)
    def _():
        partial_ref[...] = jnp.zeros_like(partial_ref)
        # class ids hoisted out of the hot loop (written once per split)
        cls_sc[...] = jax.lax.broadcasted_iota(jnp.int32, cls_sc.shape, 0)

    scores = scores_ref[...]          # (C, TB) native dtype (f32 or bf16)
    labels = labels_ref[...]          # (1, TB) int32

    # one-hot of the true class along the (sublane) class axis; no per-step iota
    onehot = cls_sc[:, 0:1] == labels                        # (C,1) vs (1,TB) -> (C,TB)

    # correct-class score per column (exact in native dtype: sum of one nonzero)
    correct = jnp.sum(jnp.where(onehot, scores, 0.0), axis=0, keepdims=True)

    # Margins over ALL classes in the native dtype (bf16 VPU math on v6e/v7x).
    # j == label contributes exactly +1 per valid column and exactly +C per
    # zero-padded column; both are corrected analytically in the wrapper, so no
    # per-element batch mask is needed here.
    margins = jnp.maximum(0.0, 1.0 - (correct - scores))

    # f32 reduction + f32 resident (8,128) accumulator (full-vreg dense store)
    partial_ref[...] += jnp.sum(margins.astype(jnp.float32))


def hinge_loss(output: jax.Array, labels: jax.Array, *, tile_b: int | None = None) -> jax.Array:
    """output: (B, C) float (any dtype), labels: (B,) int -> scalar f32 mean hinge loss.

    Precondition: 0 <= labels[i] < C for all i (matches the PyTorch indexing).
    """
    B, C = output.shape
    if tile_b is None:
        tile_b = _default_tile_b()

    # Lane-dense layout: batch on lanes (multiple of 128), classes on sublanes.
    scores_t = jnp.transpose(output)                      # (C, B), native dtype
    # int32 labels (int8 would cut label HBM bytes 4x but labels are <10% of
    # traffic; kept int32 to stay on the proven lowering path).
    labels_row = labels.astype(jnp.int32).reshape(1, B)

    TB = _round_up(min(tile_b, B), 128)                   # lanes per grid step
    n_tiles = pl.cdiv(B, TB)
    n_tc = _tensorcores_per_device()
    # Split across TensorCores only where a second core exists and there is
    # enough work (>= 8 tiles per split) to amortize the split padding.
    n_split = n_tc if (n_tc > 1 and n_tiles >= 8 * n_tc) else 1
    tiles_per_split = pl.cdiv(n_tiles, n_split)
    b_pad = n_split * tiles_per_split * TB

    if b_pad != B:
        # Zero padding is load-bearing: padded scores == 0 AND padded labels == 0
        # => each padded column contributes exactly C, corrected analytically below.
        scores_t = jnp.pad(scores_t, ((0, 0), (0, b_pad - B)))
        labels_row = jnp.pad(labels_row, ((0, 0), (0, b_pad - B)))

    partials = pl.pallas_call(
        _hinge_loss_kernel,
        out_shape=jax.ShapeDtypeStruct((n_split * 8, 128), jnp.float32),
        grid=(n_split, tiles_per_split),
        in_specs=[
            pl.BlockSpec((C, TB), lambda c, i: (0, c * tiles_per_split + i)),
            pl.BlockSpec((1, TB), lambda c, i: (0, c * tiles_per_split + i)),
        ],
        # one (8,128) accumulator block per TC split; every element of a block
        # holds that split's partial sum (full-vreg dense store, (8,128)-aligned)
        out_specs=pl.BlockSpec((8, 128), lambda c, i: (c, 0)),
        scratch_shapes=[pltpu.VMEM((C, 128), jnp.int32)],
        compiler_params=pltpu.CompilerParams(
            # TODO(synk): on v7x verify "parallel" shards the leading axis across
            # both TensorCores; if not, switch it to pltpu.CORE_PARALLEL.
            dimension_semantics=("parallel", "arbitrary")),
    )(scores_t, labels_row)

    total = jnp.sum(partials[::8, 0])                     # one entry per split
    # every valid row contributed +1 (its j == label term); every padded column
    # contributed exactly +C (zero scores, zero label).
    correction = jnp.float32(B + C * (b_pad - B))
    return (total - correction) / jnp.float32(B)


if __name__ == "__main__":
    key = jax.random.PRNGKey(0)
    k1, k2, k3, k4 = jax.random.split(key, 4)

    # --- small f32 test (shapes implied by the PyTorch module) ------------------
    B = 8
    output = jax.random.normal(k1, (B, NUM_CLASSES), dtype=jnp.float32)
    labels = jax.random.randint(k2, (B,), 0, NUM_CLASSES, dtype=jnp.int32)

    loss = hinge_loss(output, labels)
    jax.block_until_ready(loss)

    out_np = jax.device_get(output)
    lab_np = jax.device_get(labels)
    ref = 0.0
    for i in range(B):
        l = int(lab_np[i])
        for j in range(NUM_CLASSES):
            if j == l:
                continue
            ref += max(0.0, 1.0 - (float(out_np[i, l]) - float(out_np[i, j])))
    ref /= B
    assert abs(float(loss) - ref) < 1e-4, (float(loss), ref)

    # --- bf16 test: exercises the tiled grid + native-dtype margin math ---------
    B2 = 1000
    output2 = jax.random.normal(k3, (B2, NUM_CLASSES), dtype=jnp.bfloat16)
    labels2 = jax.random.randint(k4, (B2,), 0, NUM_CLASSES, dtype=jnp.int32)

    loss2 = hinge_loss(output2, labels2, tile_b=256)      # 4 tiles -> multi-step grid
    jax.block_until_ready(loss2)

    # reference with the same bf16 margin math, f32 reduction
    correct2 = jnp.take_along_axis(output2, labels2[:, None], axis=1)      # bf16
    margins2 = jnp.maximum(0.0, 1.0 - (correct2 - output2))                # bf16
    onehot2 = labels2[:, None] == jnp.arange(NUM_CLASSES)[None, :]
    ref2 = float(jnp.sum(jnp.where(onehot2, 0.0, margins2.astype(jnp.float32))) / B2)
    assert abs(float(loss2) - ref2) < 5e-3 * max(1.0, abs(ref2)), (float(loss2), ref2)

    print("KERNEL_OK")
</pallas_src>

<mosaic_0001>
module attributes {stable_mosaic.version = 11 : i64} {
  func.func @_hinge_loss_kernel(%arg0: i32, %arg1: i32, %arg2: memref<10x128xf32, #tpu.memory_space<vmem>>, %arg3: memref<1x128xi32, #tpu.memory_space<vmem>>, %arg4: memref<8x128xf32, #tpu.memory_space<vmem>>, %arg5: memref<10x128xi32, #tpu.memory_space<vmem>>) attributes {dimension_semantics = [#tpu.dimension_semantics<parallel>, #tpu.dimension_semantics<arbitrary>], iteration_bounds = array<i64: 1, 1>, scalar_prefetch = 0 : i64, scratch_operands = 1 : i64, tpu.core_type = #tpu.core_type<tc>, window_params = [{transform_indices = @transform_0, window_bounds = array<i64: 10, 128>}, {transform_indices = @transform_1, window_bounds = array<i64: 1, 128>}, {transform_indices = @transform_2, window_bounds = array<i64: 8, 128>}]} {
    %c0_i32 = arith.constant 0 : i32
    %0 = arith.cmpi eq, %arg1, %c0_i32 : i32
    %1 = arith.extui %0 : i1 to i32
    %c0_i32_0 = arith.constant 0 : i32
    %2 = arith.cmpi ne, %1, %c0_i32_0 : i32
    scf.if %2 {
      %cst_14 = arith.constant 0.000000e+00 : f32
      %27 = vector.broadcast %cst_14 : f32 to vector<8x128xf32>
      %c0_15 = arith.constant 0 : index
      %c0_16 = arith.constant 0 : index
      %28 = vector.load %arg4[%c0_15, %c0_16] : memref<8x128xf32, #tpu.memory_space<vmem>>, vector<8x128xf32>
      tpu.vector_store %arg4[%c0_15, %c0_16], %27 {strides = array<i32>} : memref<8x128xf32, #tpu.memory_space<vmem>>, vector<8x128xf32>,
      %29 = tpu.iota {dimensions = array<i32: 0>} : vector<10x128xi32>
      %c0_17 = arith.constant 0 : index
      %c0_18 = arith.constant 0 : index
      %30 = vector.load %arg5[%c0_17, %c0_18] : memref<10x128xi32, #tpu.memory_space<vmem>>, vector<10x128xi32>
      tpu.vector_store %arg5[%c0_17, %c0_18], %29 {strides = array<i32>} : memref<10x128xi32, #tpu.memory_space<vmem>>, vector<10x128xi32>,
    } else {
    }
    %c0 = arith.constant 0 : index
    %c0_1 = arith.constant 0 : index
    %3 = vector.load %arg2[%c0, %c0_1] : memref<10x128xf32, #tpu.memory_space<vmem>>, vector<10x128xf32>
    %c0_2 = arith.constant 0 : index
    %c0_3 = arith.constant 0 : index
    %4 = vector.load %arg3[%c0_2, %c0_3] : memref<1x128xi32, #tpu.memory_space<vmem>>, vector<1x128xi32>
    %c0_4 = arith.constant 0 : index
    %c0_5 = arith.constant 0 : index
    %5 = vector.load %arg5[%c0_4, %c0_5] : memref<10x128xi32, #tpu.memory_space<vmem>>, vector<10x1xi32>
    %6 = vector.broadcast %5 : vector<10x1xi32> to vector<10x128xi32>
    %7 = vector.broadcast %4 : vector<1x128xi32> to vector<10x128xi32>
    %8 = arith.cmpi eq, %6, %7 : vector<10x128xi32>
    %cst = arith.constant 0.000000e+00 : f32
    %9 = vector.broadcast %cst : f32 to vector<10x128xf32>
    %10 = arith.select %8, %3, %9 : vector<10x128xi1>, vector<10x128xf32>
    %cst_6 = arith.constant dense<0.000000e+00> : vector<128xf32>
    %11 = vector.multi_reduction <add>, %10, %cst_6 [0] : vector<10x128xf32> to vector<128xf32>
    %12 = vector.shape_cast %11 : vector<128xf32> to vector<1x128xf32>
    %13 = vector.broadcast %12 : vector<1x128xf32> to vector<10x128xf32>
    %14 = arith.subf %13, %3 : vector<10x128xf32>
    %cst_7 = arith.constant 1.000000e+00 : f32
    %15 = vector.broadcast %cst_7 : f32 to vector<10x128xf32>
    %16 = arith.subf %15, %14 : vector<10x128xf32>
    %cst_8 = arith.constant 0.000000e+00 : f32
    %17 = vector.broadcast %cst_8 : f32 to vector<10x128xf32>
    %18 = arith.maximumf %17, %16 : vector<10x128xf32>
    %c0_9 = arith.constant 0 : index
    %c0_10 = arith.constant 0 : index
    %19 = vector.load %arg4[%c0_9, %c0_10] : memref<8x128xf32, #tpu.memory_space<vmem>>, vector<8x128xf32>
    %20 = vector.shape_cast %18 : vector<10x128xf32> to vector<1x10x128xf32>
    %cst_11 = arith.constant dense<0.000000e+00> : vector<1xf32>
    %21 = vector.multi_reduction <add>, %20, %cst_11 [1, 2] : vector<1x10x128xf32> to vector<1xf32>
    %22 = vector.shape_cast %21 : vector<1xf32> to vector<1x1x1xf32>
    %23 = vector.extract %22[0, 0, 0] : f32 from vector<1x1x1xf32>
    %24 = vector.broadcast %23 : f32 to vector<8x128xf32>
    %25 = arith.addf %19, %24 : vector<8x128xf32>
    %c0_12 = arith.constant 0 : index
    %c0_13 = arith.constant 0 : index
    %26 = vector.load %arg4[%c0_12, %c0_13] : memref<8x128xf32, #tpu.memory_space<vmem>>, vector<8x128xf32>
    tpu.vector_store %arg4[%c0_12, %c0_13], %25 {strides = array<i32>} : memref<8x128xf32, #tpu.memory_space<vmem>>, vector<8x128xf32>,
    return
  }
  func.func @transform_0(%arg0: i32, %arg1: i32) -> (i32, i32) {
    %c1_i32 = arith.constant 1 : i32
    %0 = arith.muli %arg0, %c1_i32 : i32
    %1 = arith.addi %0, %arg1 : i32
    %c0_i32 = arith.constant 0 : i32
    %c0_i32_0 = arith.constant 0 : i32
    return %c0_i32, %1 : i32, i32
  }
  func.func @transform_1(%arg0: i32, %arg1: i32) -> (i32, i32) {
    %c1_i32 = arith.constant 1 : i32
    %0 = arith.muli %arg0, %c1_i32 : i32
    %1 = arith.addi %0, %arg1 : i32
    %c0_i32 = arith.constant 0 : i32
    %c0_i32_0 = arith.constant 0 : i32
    return %c0_i32, %1 : i32, i32
  }
  func.func @transform_2(%arg0: i32, %arg1: i32) -> (i32, i32) {
    %c0_i32 = arith.constant 0 : i32
    %c0_i32_0 = arith.constant 0 : i32
    return %arg0, %c0_i32 : i32, i32
  }
}

</mosaic_0001>

<llo_original>
// kernel: tpu_custom_call.1
$region0: #{tpu_custom_call.1}
  #allocation0 [shape = 'u32[]', space=smem, size = 0x4, offset = 0x4, fixed_abs, tag = 'smem constant byte address 0x4 - core index']
  #allocation1 [shape = 'u32[72,128]{1,0:T(1,128)}', space=vmem, size = 0x9000, scoped, tag = 'internal scratch']
  #allocation2 [shape = 's32[10,128]{1,0:T(8,128)}', space=vmem, size = 0x2000, scoped, tag = 'scratch operand']
  %s0 = inlined_call_operand.hbm [shape: f32[10,128], index: 0, kind: input, shape index: {}]
  %s1 = inlined_call_operand.hbm [shape: s32[1,128], index: 1, kind: input, shape index: {}]
  %s2 = inlined_call_operand.hbm [shape: f32[8,128], index: 2, kind: output, shape index: {}]
  %s3 = sld [smem:[#allocation0]]
  $region30: #{tpu_custom_call.1} parent=0
    _
  %s5 = ssub.s32 1, %s3
  %s6 = scalar_select 0, %s5, %s3
  $region1: #{tpu_custom_call.1} parent=0
    #allocation3 [shape = 'u8[8192]{0}', space=vmem, size = 0x2000, scoped, tag = 'input window, operand 0, single buffered']
    #allocation4 [shape = 's32[1]{0}', space=sflag, size = 0x4, scoped, tag = 'scoped memory for tpu_custom_call.1']
    #allocation5 [shape = 's32[1]{0}', space=sflag, size = 0x4, scoped, tag = 'scoped memory for tpu_custom_call.1']
    #allocation6 [shape = 'u8[512]{0}', space=vmem, size = 0x400, scoped, tag = 'input window, operand 1, single buffered']
    #allocation7 [shape = 's32[1]{0}', space=sflag, size = 0x4, scoped, tag = 'scoped memory for tpu_custom_call.1']
    #allocation8 [shape = 'u8[4096]{0}', space=vmem, size = 0x1000, scoped, tag = 'output window, operand 0, single buffered']
    %7 = vsyncpa [#allocation4], 0
    %8 = vsyncpa [#allocation7], 0
    %9 = vsyncpa [#allocation5], 0
    // Predicated region
    $region2: #{tpu_custom_call.1} parent=1 // pred_check
      _
    $region3: #{tpu_custom_call.1} parent=1 // pred_check_branch
      %11 = sbr.rel (0) target = $region5
    $region4: #{tpu_custom_call.1} parent=1 // pred_region
      %s12 = sadd.s32 0, 0
      %14 = vsyncadd [#allocation4], 0
      %s15 = smul.addr %s12, 8
      %s16 = scalar_lea.hbm %s0, %s15
      %s17 = sshll.u32 %s16, 4
      %s18 = int_to_ptr.hbm [resolvable:$true] %s17
      %s19 = sshll.u32 [#allocation3], 4
      %s20 = int_to_ptr.vmem [resolvable:$true] %s19
      %25 = dma.hbm_to_vmem [thread:$0]  %s18, 256, %s20, [#allocation4], 128, 128, 8
    $region5: #{tpu_custom_call.1} parent=1 // pred_fallthru
      _
    // Predicated region
    $region6: #{tpu_custom_call.1} parent=1 // pred_check
      _
    $region7: #{tpu_custom_call.1} parent=1 // pred_check_branch
      %27 = sbr.rel (0) target = $region9
    $region8: #{tpu_custom_call.1} parent=1 // pred_region
      %s28 = sadd.s32 0, 0
      %30 = vsyncadd [#allocation7], 0
      %s31 = scalar_lea.hbm %s1, %s28
      %s33 = sshll.u32 %s31, 4
      %s34 = int_to_ptr.hbm [resolvable:$true] %s33
      %s35 = sshll.u32 [#allocation6], 4
      %s36 = int_to_ptr.vmem [resolvable:$true] %s35
      %38 = dma.hbm_to_vmem [thread:$0]  %s34, 16, %s36, [#allocation7]
    $region9: #{tpu_custom_call.1} parent=1 // pred_fallthru
      _
    // Predicated region
    $region10: #{tpu_custom_call.1} parent=1 // pred_check
      _
    $region11: #{tpu_custom_call.1} parent=1 // pred_check_branch
      %40 = sbr.rel (0) target = $region13
    $region12: #{tpu_custom_call.1} parent=1 // pred_region
      %42 = dma.done [#allocation4], 256
    $region13: #{tpu_custom_call.1} parent=1 // pred_fallthru
      _
    // Predicated region
    $region14: #{tpu_custom_call.1} parent=1 // pred_check
      _
    $region15: #{tpu_custom_call.1} parent=1 // pred_check_branch
      %44 = sbr.rel (0) target = $region17
    $region16: #{tpu_custom_call.1} parent=1 // pred_region
      %46 = dma.done [#allocation7], 16
    $region17: #{tpu_custom_call.1} parent=1 // pred_fallthru
      _
    %s47 = sadd.s32 0, 0
    %s48 = sadd.s32 0, 0
    %p49 = scmp.eq.s32.totalorder 0, 0
    // Predicated region
    $region18: #{tpu_custom_call.1} parent=1 // pred_check
      %p50 = pneg %p49
    $region19: #{tpu_custom_call.1} parent=1 // pred_check_branch
      %52 = sbr.rel (%p50) target = $region21
    $region20: #{tpu_custom_call.1} parent=1 // pred_region
      %53 = vst [vmem:[#allocation8] sm:$0xff] 0.0
      %v54 = vlaneseq
      %v55 = vshrl.u32 %v54, 7
      %v56 = vadd.s32 %v55, 8
      %57 = vst [vmem:[#allocation2] sm:$0xff] %v55
      %58 = vst [vmem:[#allocation2 + $0x8] sm:$0x3] %v56
    $region21: #{tpu_custom_call.1} parent=1 // pred_fallthru
      _
    %v59 = vld [vmem:[#allocation3] sm:$0xff]
    %v60 = vld [vmem:[#allocation3 + $0x8] sm:$0x3]
    %v61 = vld [vmem:[#allocation6] sm:$0x1]
    %v62 = vld [vmem:[#allocation2] sm:$0xff]
    %v63 = vld [vmem:[#allocation2 + $0x8] sm:$0x3]
    %64 = vset.pattern.permute.xlu0 0
    %65 = vperm.xlu0 %64, %v62
    %v66 = vpop.permute.xlu0 %65
    %67 = vset.pattern.permute.xlu0 0
    %68 = vperm.xlu0 %67, %v63
    %v69 = vpop.permute.xlu0 %68
    %v70 = vperm.slane %v61, 0
    %vm71 = vcmp.eq.s32.totalorder %v66, %v70
    %vm72 = vcmp.eq.s32.totalorder %v69, %v70
    %v73 = vsel %vm71, %v59, 0.0
    %v74 = vsel %vm72, %v60, 0.0
    %vm75 = vcmask 1041408
    %v76 = vsel %vm75, %v74, 0.0
    %v77 = vadd.f32 %v73, %v76
    %v78 = vrot.slane %v77, 4
    %v79 = vadd.f32 %v77, %v78
    %v80 = vrot.slane %v79, 2
    %v81 = vadd.f32 %v79, %v80
    %v82 = vrot.slane %v81, 1
    %v83 = vadd.f32 %v81, %v82
    %v84 = vsub.f32 %v83, %v59
    %v85 = vsub.f32 %v83, %v60
    %v86 = vsub.f32 1.0, %v84
    %v87 = vsub.f32 1.0, %v85
    %v88 = vmax.f32 %v86, 0.0
    %v89 = vmax.f32 %v87, 0.0
    %v90 = vld [vmem:[#allocation8] sm:$0xff]
    %v91 = vsel %vm75, %v89, 0.0
    %v92 = vadd.f32 %v88, %v91
    %93 = vadd.xlane.f32.xlu0 %v92
    %v94 = vpop.xlane.xlu0 %93
    %v95 = vrot.slane %v94, 4
    %v96 = vadd.f32 %v94, %v95
    %v97 = vrot.slane %v96, 2
    %v98 = vadd.f32 %v96, %v97
    %v99 = vrot.slane %v98, 1
    %v100 = vadd.f32 %v98, %v99
    %s101 = vtos %v100
    %v102 = vstv %s101
    %v103 = vadd.f32 %v90, %v102
    %104 = vst [vmem:[#allocation8] sm:$0xff] %v103
    // Predicated region
    $region22: #{tpu_custom_call.1} parent=1 // pred_check
      _
    $region23: #{tpu_custom_call.1} parent=1 // pred_check_branch
      %106 = sbr.rel (0) target = $region25
    $region24: #{tpu_custom_call.1} parent=1 // pred_region
      %108 = vsyncadd [#allocation5], 0
      %s110 = sshll.u32 [#allocation8], 4
      %s111 = int_to_ptr.vmem [resolvable:$true] %s110
      %s112 = sshll.u32 %s2, 4
      %s113 = int_to_ptr.hbm [resolvable:$true] %s112
      %115 = dma.vmem_to_hbm [thread:$0]  %s111, 128, %s113, [#allocation5]
    $region25: #{tpu_custom_call.1} parent=1 // pred_fallthru
      _
    // Predicated region
    $region26: #{tpu_custom_call.1} parent=1 // pred_check
      _
    $region27: #{tpu_custom_call.1} parent=1 // pred_check_branch
      %117 = sbr.rel (0) target = $region29
    $region28: #{tpu_custom_call.1} parent=1 // pred_region
      %119 = dma.done [#allocation5], 128
    $region29: #{tpu_custom_call.1} parent=1 // pred_fallthru
      _
    %120 = vsyncpa [#allocation4], 1
    %121 = vsyncpa [#allocation7], 1
    %122 = vsyncpa [#allocation5], 1

</llo_original>
